<compile_context>
chip_gen: v5e
topology: v5e:2x2
jax: 0.10.0
libtpu: 0.0.40
codegen_flags: <defaults>
</compile_context>

<pallas_src>
import functools

import jax
import jax.numpy as jnp
from jax.experimental import pallas as pl
from jax.experimental.pallas import tpu as pltpu


def _round_up(n, m):
    return ((n + m - 1) // m) * m


def _fused_kernel(x_ref, w1t_ref, b1_ref, dw_ref, db_ref, o_ref):
    # x_ref  : (4, TB)   f32, batch along lanes (lane-dense)
    # w1t_ref: (128, 4)  first-layer weight, (out, in)
    # b1_ref : (128, 1)
    # dw_ref : (128, 1)  w2[:,1] - w2[:,0]
    # db_ref : (1, 1)    b2[1] - b2[0]   (SMEM scalar)
    # o_ref  : (2, TB)   row 0 = p(class 0), row 1 = p(class 1)
    x = x_ref[...]                                  # (4, TB)
    w1t = w1t_ref[...]                              # (128, 4)

    # --- layer 1: h = relu(W1 x + b1) as 4 VPU rank-1 updates (K=4). ---
    h = w1t[:, 0:1] * x[0:1, :]
    for k in range(1, 4):                           # unrolled at trace time
        h = h + w1t[:, k:k + 1] * x[k:k + 1, :]
    h = jnp.maximum(h + b1_ref[...], 0.0)           # (128, TB)

    # --- layer 2 + 2-class softmax == sigmoid of the logit difference. ---
    d = jnp.sum(h * dw_ref[...], axis=0, keepdims=True) + db_ref[0, 0]  # (1, TB)

    # stable sigmoid pair: p1 = sigmoid(d), p0 = sigmoid(-d), p0 + p1 == 1
    e = jnp.exp(-jnp.abs(d))                        # EUP, in (0, 1]
    inv = 1.0 / (1.0 + e)
    big = inv
    small = e * inv
    pos = d >= 0.0
    p1 = jnp.where(pos, big, small)
    p0 = jnp.where(pos, small, big)
    o_ref[0:1, :] = p0
    o_ref[1:2, :] = p1


@functools.partial(jax.jit, static_argnames=("tb",))
def linear4x2_forward(x, w1, b1, w2, b2, *, tb=4096):
    """x: (B,4) f32; w1: (4,128); b1: (128,); w2: (128,2); b2: (2,) -> (B,2) probs."""
    B = x.shape[0]

    # Batch tile: multiple of 256 (lane-dense; fills v6e/v7x 256-wide units,
    # and 256 is a 128-multiple for v5e). Don't tile larger than needed.
    tb_eff = max(256, min(tb, _round_up(B, 256)))
    b_pad = _round_up(B, tb_eff)

    # Lane-dense transposed operands (zero-pad the batch; padded columns are
    # computed harmlessly and sliced off below).
    x_t = jnp.zeros((4, b_pad), jnp.float32).at[:, :B].set(
        x.T.astype(jnp.float32))
    w1t = w1.T.astype(jnp.float32)                          # (128, 4)
    b1c = b1.reshape(128, 1).astype(jnp.float32)            # (128, 1)
    dwc = (w2[:, 1] - w2[:, 0]).reshape(128, 1).astype(jnp.float32)
    dbs = (b2[1] - b2[0]).reshape(1, 1).astype(jnp.float32)

    out_t = pl.pallas_call(
        _fused_kernel,
        out_shape=jax.ShapeDtypeStruct((2, b_pad), jnp.float32),
        grid=(b_pad // tb_eff,),
        in_specs=[
            pl.BlockSpec((4, tb_eff), lambda i: (0, i)),     # x: streamed tiles
            pl.BlockSpec((128, 4), lambda i: (0, 0)),        # weights: resident
            pl.BlockSpec((128, 1), lambda i: (0, 0)),
            pl.BlockSpec((128, 1), lambda i: (0, 0)),
            pl.BlockSpec(memory_space=pltpu.MemorySpace.SMEM),  # db scalar
        ],
        out_specs=pl.BlockSpec((2, tb_eff), lambda i: (0, i)),
        compiler_params=pltpu.CompilerParams(
            dimension_semantics=("parallel",),   # megacore on v7x; no-op otherwise
        ),
    )(x_t, w1t, b1c, dwc, dbs)

    return out_t[:, :B].T


def init_params(key):
    """Deterministic synthetic init matching nn.Linear shapes.

    PyTorch stores Linear weight as (out, in); we keep the transposed (in, out)
    layout so the math is x @ W (+ b) exactly as in the reference module.
    """
    k1, k2, k3, k4 = jax.random.split(key, 4)
    lim1 = 1.0 / jnp.sqrt(4.0)
    lim2 = 1.0 / jnp.sqrt(128.0)
    w1 = jax.random.uniform(k1, (4, 128), jnp.float32, -lim1, lim1)
    b1 = jax.random.uniform(k2, (128,), jnp.float32, -lim1, lim1)
    w2 = jax.random.uniform(k3, (128, 2), jnp.float32, -lim2, lim2)
    b2 = jax.random.uniform(k4, (2,), jnp.float32, -lim2, lim2)
    return w1, b1, w2, b2


if __name__ == "__main__":
    key = jax.random.PRNGKey(0)
    k_in1, k_in2, k_par = jax.random.split(key, 3)

    w1, b1, w2, b2 = init_params(k_par)

    def reference(x):
        h = jnp.maximum(x @ w1 + b1, 0.0)
        return jax.nn.softmax(h @ w2 + b2, axis=1)

    # Small batch (pads to one 256-wide lane tile, grid of 1).
    B = 8
    x = jax.random.normal(k_in1, (B, 4), jnp.float32)
    out = jax.block_until_ready(linear4x2_forward(x, w1, b1, w2, b2))
    ref = reference(x)
    assert out.shape == (B, 2)
    assert jnp.allclose(out, ref, atol=1e-5, rtol=1e-5)
    assert jnp.allclose(jnp.sum(out, axis=1), 1.0, atol=1e-5)

    # Larger, non-multiple batch exercising the tiled grid (4 steps of 256)
    # plus padding and resident-weight reuse across grid steps.
    B2 = 1000
    x2 = jax.random.normal(k_in2, (B2, 4), jnp.float32)
    out2 = jax.block_until_ready(linear4x2_forward(x2, w1, b1, w2, b2, tb=256))
    ref2 = reference(x2)
    assert out2.shape == (B2, 2)
    assert jnp.allclose(out2, ref2, atol=1e-5, rtol=1e-5)
    assert jnp.allclose(jnp.sum(out2, axis=1), 1.0, atol=1e-5)

    print("KERNEL_OK")
</pallas_src>

<mosaic_0001>
module attributes {stable_mosaic.version = 11 : i64} {
  func.func @_fused_kernel(%arg0: i32, %arg1: memref<4x256xf32, #tpu.memory_space<vmem>>, %arg2: memref<128x4xf32, #tpu.memory_space<vmem>>, %arg3: memref<128x1xf32, #tpu.memory_space<vmem>>, %arg4: memref<128x1xf32, #tpu.memory_space<vmem>>, %arg5: memref<1x1xf32, #tpu.memory_space<smem>>, %arg6: memref<2x256xf32, #tpu.memory_space<vmem>>) attributes {dimension_semantics = [#tpu.dimension_semantics<parallel>], iteration_bounds = array<i64: 1>, scalar_prefetch = 0 : i64, scratch_operands = 0 : i64, tpu.core_type = #tpu.core_type<tc>, window_params = [{transform_indices = @transform_0, window_bounds = array<i64: 4, 256>}, {pipeline_mode = #tpu.pipeline_mode<synchronous>, transform_indices = @transform_1, window_bounds = array<i64: 128, 4>}, {pipeline_mode = #tpu.pipeline_mode<synchronous>, transform_indices = @transform_2, window_bounds = array<i64: 128, 1>}, {pipeline_mode = #tpu.pipeline_mode<synchronous>, transform_indices = @transform_3, window_bounds = array<i64: 128, 1>}, {transform_indices = @transform_4, window_bounds = array<i64: 1, 1>}, {transform_indices = @transform_5, window_bounds = array<i64: 2, 256>}]} {
    %c0 = arith.constant 0 : index
    %c0_0 = arith.constant 0 : index
    %0 = vector.load %arg1[%c0, %c0_0] : memref<4x256xf32, #tpu.memory_space<vmem>>, vector<4x256xf32>
    %c0_1 = arith.constant 0 : index
    %c0_2 = arith.constant 0 : index
    %1 = vector.load %arg2[%c0_1, %c0_2] : memref<128x4xf32, #tpu.memory_space<vmem>>, vector<128x4xf32>
    %2 = vector.extract_strided_slice %1 {offsets = [0, 0], sizes = [128, 1], strides = [1, 1]} : vector<128x4xf32> to vector<128x1xf32>
    %3 = vector.extract_strided_slice %0 {offsets = [0, 0], sizes = [1, 256], strides = [1, 1]} : vector<4x256xf32> to vector<1x256xf32>
    %4 = vector.broadcast %2 : vector<128x1xf32> to vector<128x256xf32>
    %5 = vector.broadcast %3 : vector<1x256xf32> to vector<128x256xf32>
    %6 = arith.mulf %4, %5 : vector<128x256xf32>
    %7 = vector.extract_strided_slice %1 {offsets = [0, 1], sizes = [128, 1], strides = [1, 1]} : vector<128x4xf32> to vector<128x1xf32>
    %8 = vector.extract_strided_slice %0 {offsets = [1, 0], sizes = [1, 256], strides = [1, 1]} : vector<4x256xf32> to vector<1x256xf32>
    %9 = vector.broadcast %7 : vector<128x1xf32> to vector<128x256xf32>
    %10 = vector.broadcast %8 : vector<1x256xf32> to vector<128x256xf32>
    %11 = arith.mulf %9, %10 : vector<128x256xf32>
    %12 = arith.addf %6, %11 : vector<128x256xf32>
    %13 = vector.extract_strided_slice %1 {offsets = [0, 2], sizes = [128, 1], strides = [1, 1]} : vector<128x4xf32> to vector<128x1xf32>
    %14 = vector.extract_strided_slice %0 {offsets = [2, 0], sizes = [1, 256], strides = [1, 1]} : vector<4x256xf32> to vector<1x256xf32>
    %15 = vector.broadcast %13 : vector<128x1xf32> to vector<128x256xf32>
    %16 = vector.broadcast %14 : vector<1x256xf32> to vector<128x256xf32>
    %17 = arith.mulf %15, %16 : vector<128x256xf32>
    %18 = arith.addf %12, %17 : vector<128x256xf32>
    %19 = vector.extract_strided_slice %1 {offsets = [0, 3], sizes = [128, 1], strides = [1, 1]} : vector<128x4xf32> to vector<128x1xf32>
    %20 = vector.extract_strided_slice %0 {offsets = [3, 0], sizes = [1, 256], strides = [1, 1]} : vector<4x256xf32> to vector<1x256xf32>
    %21 = vector.broadcast %19 : vector<128x1xf32> to vector<128x256xf32>
    %22 = vector.broadcast %20 : vector<1x256xf32> to vector<128x256xf32>
    %23 = arith.mulf %21, %22 : vector<128x256xf32>
    %24 = arith.addf %18, %23 : vector<128x256xf32>
    %c0_3 = arith.constant 0 : index
    %c0_4 = arith.constant 0 : index
    %25 = vector.load %arg3[%c0_3, %c0_4] : memref<128x1xf32, #tpu.memory_space<vmem>>, vector<128x1xf32>
    %26 = vector.broadcast %25 : vector<128x1xf32> to vector<128x256xf32>
    %27 = arith.addf %24, %26 : vector<128x256xf32>
    %cst = arith.constant 0.000000e+00 : f32
    %28 = vector.broadcast %cst : f32 to vector<128x256xf32>
    %29 = arith.maximumf %27, %28 : vector<128x256xf32>
    %c0_5 = arith.constant 0 : index
    %c0_6 = arith.constant 0 : index
    %30 = vector.load %arg4[%c0_5, %c0_6] : memref<128x1xf32, #tpu.memory_space<vmem>>, vector<128x1xf32>
    %31 = vector.broadcast %30 : vector<128x1xf32> to vector<128x256xf32>
    %32 = arith.mulf %29, %31 : vector<128x256xf32>
    %cst_7 = arith.constant dense<0.000000e+00> : vector<256xf32>
    %33 = vector.multi_reduction <add>, %32, %cst_7 [0] : vector<128x256xf32> to vector<256xf32>
    %34 = vector.shape_cast %33 : vector<256xf32> to vector<1x256xf32>
    %c0_8 = arith.constant 0 : index
    %c0_9 = arith.constant 0 : index
    %35 = memref.load %arg5[%c0_8, %c0_9] : memref<1x1xf32, #tpu.memory_space<smem>>
    %36 = vector.broadcast %35 : f32 to vector<1x256xf32>
    %37 = arith.addf %34, %36 : vector<1x256xf32>
    %38 = math.absf %37 : vector<1x256xf32>
    %cst_10 = arith.constant 0.000000e+00 : f32
    %39 = vector.broadcast %cst_10 : f32 to vector<1x256xf32>
    %40 = arith.subf %39, %38 : vector<1x256xf32>
    %41 = math.exp %40 : vector<1x256xf32>
    %cst_11 = arith.constant 1.000000e+00 : f32
    %42 = vector.broadcast %cst_11 : f32 to vector<1x256xf32>
    %43 = arith.addf %42, %41 : vector<1x256xf32>
    %cst_12 = arith.constant 1.000000e+00 : f32
    %44 = vector.broadcast %cst_12 : f32 to vector<1x256xf32>
    %45 = arith.divf %44, %43 : vector<1x256xf32>
    %46 = arith.mulf %41, %45 : vector<1x256xf32>
    %cst_13 = arith.constant 0.000000e+00 : f32
    %47 = vector.broadcast %cst_13 : f32 to vector<1x256xf32>
    %48 = arith.cmpf oge, %37, %47 : vector<1x256xf32>
    %49 = arith.select %48, %45, %46 : vector<1x256xi1>, vector<1x256xf32>
    %50 = arith.select %48, %46, %45 : vector<1x256xi1>, vector<1x256xf32>
    %c0_14 = arith.constant 0 : index
    %c0_15 = arith.constant 0 : index
    %51 = vector.load %arg6[%c0_14, %c0_15] : memref<2x256xf32, #tpu.memory_space<vmem>>, vector<1x256xf32>
    tpu.vector_store %arg6[%c0_14, %c0_15], %50 {strides = array<i32>} : memref<2x256xf32, #tpu.memory_space<vmem>>, vector<1x256xf32>,
    %c1 = arith.constant 1 : index
    %c0_16 = arith.constant 0 : index
    %52 = vector.load %arg6[%c1, %c0_16] : memref<2x256xf32, #tpu.memory_space<vmem>>, vector<1x256xf32>
    tpu.vector_store %arg6[%c1, %c0_16], %49 {strides = array<i32>} : memref<2x256xf32, #tpu.memory_space<vmem>>, vector<1x256xf32>,
    return
  }
  func.func @transform_0(%arg0: i32) -> (i32, i32) {
    %c0_i32 = arith.constant 0 : i32
    %c0_i32_0 = arith.constant 0 : i32
    return %c0_i32, %arg0 : i32, i32
  }
  func.func @transform_1(%arg0: i32) -> (i32, i32) {
    %c0_i32 = arith.constant 0 : i32
    %c0_i32_0 = arith.constant 0 : i32
    %c0_i32_1 = arith.constant 0 : i32
    return %c0_i32, %c0_i32_0 : i32, i32
  }
  func.func @transform_2(%arg0: i32) -> (i32, i32) {
    %c0_i32 = arith.constant 0 : i32
    %c0_i32_0 = arith.constant 0 : i32
    %c0_i32_1 = arith.constant 0 : i32
    return %c0_i32, %c0_i32_0 : i32, i32
  }
  func.func @transform_3(%arg0: i32) -> (i32, i32) {
    %c0_i32 = arith.constant 0 : i32
    %c0_i32_0 = arith.constant 0 : i32
    %c0_i32_1 = arith.constant 0 : i32
    return %c0_i32, %c0_i32_0 : i32, i32
  }
  func.func @transform_4(%arg0: i32) -> (i32, i32) {
    %c0_i32 = arith.constant 0 : i32
    %c0_i32_0 = arith.constant 0 : i32
    %c0_i32_1 = arith.constant 0 : i32
    return %c0_i32, %c0_i32_0 : i32, i32
  }
  func.func @transform_5(%arg0: i32) -> (i32, i32) {
    %c0_i32 = arith.constant 0 : i32
    %c0_i32_0 = arith.constant 0 : i32
    return %c0_i32, %arg0 : i32, i32
  }
}

</mosaic_0001>

<llo_original>
// kernel: linear4x2_forward.1
$region0: #{linear4x2_forward.1}
  #allocation0 [shape = 'u32[]', space=smem, size = 0x4, offset = 0x4, fixed_abs, tag = 'smem constant byte address 0x4 - core index']
  #allocation1 [shape = 'u32[72,128]{1,0:T(1,128)}', space=vmem, size = 0x9000, scoped, tag = 'internal scratch']
  #allocation2 [shape = 'f32[1,1]{1,0:T(1,128)S(6)}', space=smem, size = 0x200, scoped, tag = 'scoped memory for linear4x2_forward.1']
  %s0 = inlined_call_operand.vmem [shape: f32[4,256], index: 0, kind: input, shape index: {}]
  %s1 = inlined_call_operand.vmem [shape: f32[128,4], index: 1, kind: input, shape index: {}]
  %s2 = inlined_call_operand.vmem [shape: f32[128,1], index: 2, kind: input, shape index: {}]
  %s3 = inlined_call_operand.vmem [shape: f32[128,1], index: 3, kind: input, shape index: {}]
  %s4 = inlined_call_operand.<no memory space> [shape: f32[1,1], index: 4, kind: input, shape index: {}]
  %s5 = inlined_call_operand.vmem [shape: f32[2,256], index: 5, kind: output, shape index: {}]
  %s6 = sld [smem:[#allocation0]]
  $region30: #{linear4x2_forward.1} parent=0
    _
  %s8 = ssub.s32 1, %s6
  %s9 = scalar_select 0, %s8, %s6
  %10 = sst [smem:[#allocation2]] %s4
  // Predicated region
  $region2: #{linear4x2_forward.1} parent=0 // pred_check
    _
  $region3: #{linear4x2_forward.1} parent=0 // pred_check_branch
    %12 = sbr.rel (0) target = $region5
  $region4: #{linear4x2_forward.1} parent=0 // pred_region
    _
  $region5: #{linear4x2_forward.1} parent=0 // pred_fallthru
    _
  // Predicated region
  $region6: #{linear4x2_forward.1} parent=0 // pred_check
    _
  $region7: #{linear4x2_forward.1} parent=0 // pred_check_branch
    %14 = sbr.rel (0) target = $region9
  $region8: #{linear4x2_forward.1} parent=0 // pred_region
    _
  $region9: #{linear4x2_forward.1} parent=0 // pred_fallthru
    _
  // Predicated region
  $region10: #{linear4x2_forward.1} parent=0 // pred_check
    _
  $region11: #{linear4x2_forward.1} parent=0 // pred_check_branch
    %16 = sbr.rel (0) target = $region13
  $region12: #{linear4x2_forward.1} parent=0 // pred_region
    _
  $region13: #{linear4x2_forward.1} parent=0 // pred_fallthru
    _
  // Predicated region
  $region14: #{linear4x2_forward.1} parent=0 // pred_check
    _
  $region15: #{linear4x2_forward.1} parent=0 // pred_check_branch
    %18 = sbr.rel (0) target = $region17
  $region16: #{linear4x2_forward.1} parent=0 // pred_region
    _
  $region17: #{linear4x2_forward.1} parent=0 // pred_fallthru
    _
  // Predicated region
  $region18: #{linear4x2_forward.1} parent=0 // pred_check
    _
  $region19: #{linear4x2_forward.1} parent=0 // pred_check_branch
    %20 = sbr.rel (0) target = $region21
  $region20: #{linear4x2_forward.1} parent=0 // pred_region
    _
  $region21: #{linear4x2_forward.1} parent=0 // pred_fallthru
    _
  %v21 = vld [vmem:[%s0] sm:$0xff]
  %v22 = vld [vmem:[%s1] sm:$0xff]
  %v23 = vld [vmem:[%s1 + $0x8] sm:$0xff]
  %v24 = vld [vmem:[%s1 + $0x10] sm:$0xff]
  %v25 = vld [vmem:[%s1 + $0x18] sm:$0xff]
  %v26 = vld [vmem:[%s1 + $0x20] sm:$0xff]
  %v27 = vld [vmem:[%s1 + $0x28] sm:$0xff]
  %v28 = vld [vmem:[%s1 + $0x30] sm:$0xff]
  %v29 = vld [vmem:[%s1 + $0x38] sm:$0xff]
  %v30 = vld [vmem:[%s1 + $0x40] sm:$0xff]
  %v31 = vld [vmem:[%s1 + $0x48] sm:$0xff]
  %v32 = vld [vmem:[%s1 + $0x50] sm:$0xff]
  %v33 = vld [vmem:[%s1 + $0x58] sm:$0xff]
  %v34 = vld [vmem:[%s1 + $0x60] sm:$0xff]
  %v35 = vld [vmem:[%s1 + $0x68] sm:$0xff]
  %v36 = vld [vmem:[%s1 + $0x70] sm:$0xff]
  %v37 = vld [vmem:[%s1 + $0x78] sm:$0xff]
  %39 = vset.pattern.permute.xlu0 0
  %40 = vperm.xlu0 %39, %v22
  %v41 = vpop.permute.xlu0 %40
  %44 = vset.pattern.permute.xlu0 0
  %45 = vperm.xlu0 %44, %v23
  %v46 = vpop.permute.xlu0 %45
  %49 = vset.pattern.permute.xlu0 0
  %50 = vperm.xlu0 %49, %v24
  %v51 = vpop.permute.xlu0 %50
  %54 = vset.pattern.permute.xlu0 0
  %55 = vperm.xlu0 %54, %v25
  %v56 = vpop.permute.xlu0 %55
  %59 = vset.pattern.permute.xlu0 0
  %60 = vperm.xlu0 %59, %v26
  %v61 = vpop.permute.xlu0 %60
  %64 = vset.pattern.permute.xlu0 0
  %65 = vperm.xlu0 %64, %v27
  %v66 = vpop.permute.xlu0 %65
  %69 = vset.pattern.permute.xlu0 0
  %70 = vperm.xlu0 %69, %v28
  %v71 = vpop.permute.xlu0 %70
  %74 = vset.pattern.permute.xlu0 0
  %75 = vperm.xlu0 %74, %v29
  %v76 = vpop.permute.xlu0 %75
  %79 = vset.pattern.permute.xlu0 0
  %80 = vperm.xlu0 %79, %v30
  %v81 = vpop.permute.xlu0 %80
  %84 = vset.pattern.permute.xlu0 0
  %85 = vperm.xlu0 %84, %v31
  %v86 = vpop.permute.xlu0 %85
  %89 = vset.pattern.permute.xlu0 0
  %90 = vperm.xlu0 %89, %v32
  %v91 = vpop.permute.xlu0 %90
  %94 = vset.pattern.permute.xlu0 0
  %95 = vperm.xlu0 %94, %v33
  %v96 = vpop.permute.xlu0 %95
  %99 = vset.pattern.permute.xlu0 0
  %100 = vperm.xlu0 %99, %v34
  %v101 = vpop.permute.xlu0 %100
  %104 = vset.pattern.permute.xlu0 0
  %105 = vperm.xlu0 %104, %v35
  %v106 = vpop.permute.xlu0 %105
  %109 = vset.pattern.permute.xlu0 0
  %110 = vperm.xlu0 %109, %v36
  %v111 = vpop.permute.xlu0 %110
  %114 = vset.pattern.permute.xlu0 0
  %115 = vperm.xlu0 %114, %v37
  %v116 = vpop.permute.xlu0 %115
  %v119 = vperm.slane %v21, 0
  %v120 = vperm.slane %v21, 4
  %v123 = vperm.slane %v119, 0
  %v124 = vperm.slane %v120, 0
  %v125 = vmul.f32 %v41, %v123
  %v126 = vmul.f32 %v41, %v124
  %v127 = vmul.f32 %v46, %v123
  %v128 = vmul.f32 %v46, %v124
  %v129 = vmul.f32 %v51, %v123
  %v130 = vmul.f32 %v51, %v124
  %v131 = vmul.f32 %v56, %v123
  %v132 = vmul.f32 %v56, %v124
  %v133 = vmul.f32 %v61, %v123
  %v134 = vmul.f32 %v61, %v124
  %v135 = vmul.f32 %v66, %v123
  %v136 = vmul.f32 %v66, %v124
  %v137 = vmul.f32 %v71, %v123
  %v138 = vmul.f32 %v71, %v124
  %v139 = vmul.f32 %v76, %v123
  %v140 = vmul.f32 %v76, %v124
  %v141 = vmul.f32 %v81, %v123
  %v142 = vmul.f32 %v81, %v124
  %v143 = vmul.f32 %v86, %v123
  %v144 = vmul.f32 %v86, %v124
  %v145 = vmul.f32 %v91, %v123
  %v146 = vmul.f32 %v91, %v124
  %v147 = vmul.f32 %v96, %v123
  %v148 = vmul.f32 %v96, %v124
  %v149 = vmul.f32 %v101, %v123
  %v150 = vmul.f32 %v101, %v124
  %v151 = vmul.f32 %v106, %v123
  %v152 = vmul.f32 %v106, %v124
  %v153 = vmul.f32 %v111, %v123
  %v154 = vmul.f32 %v111, %v124
  %v155 = vmul.f32 %v116, %v123
  %v156 = vmul.f32 %v116, %v124
  %157 = vset.pattern.permute.xlu0 1
  %158 = vperm.xlu0 %157, %v22
  %v159 = vpop.permute.xlu0 %158
  %161 = vset.pattern.permute.xlu0 1
  %162 = vperm.xlu0 %161, %v23
  %v163 = vpop.permute.xlu0 %162
  %165 = vset.pattern.permute.xlu0 1
  %166 = vperm.xlu0 %165, %v24
  %v167 = vpop.permute.xlu0 %166
  %169 = vset.pattern.permute.xlu0 1
  %170 = vperm.xlu0 %169, %v25
  %v171 = vpop.permute.xlu0 %170
  %173 = vset.pattern.permute.xlu0 1
  %174 = vperm.xlu0 %173, %v26
  %v175 = vpop.permute.xlu0 %174
  %177 = vset.pattern.permute.xlu0 1
  %178 = vperm.xlu0 %177, %v27
  %v179 = vpop.permute.xlu0 %178
  %181 = vset.pattern.permute.xlu0 1
  %182 = vperm.xlu0 %181, %v28
  %v183 = vpop.permute.xlu0 %182
  %185 = vset.pattern.permute.xlu0 1
  %186 = vperm.xlu0 %185, %v29
  %v187 = vpop.permute.xlu0 %186
  %189 = vset.pattern.permute.xlu0 1
  %190 = vperm.xlu0 %189, %v30
  %v191 = vpop.permute.xlu0 %190
  %193 = vset.pattern.permute.xlu0 1
  %194 = vperm.xlu0 %193, %v31
  %v195 = vpop.permute.xlu0 %194
  %197 = vset.pattern.permute.xlu0 1
  %198 = vperm.xlu0 %197, %v32
  %v199 = vpop.permute.xlu0 %198
  %201 = vset.pattern.permute.xlu0 1
  %202 = vperm.xlu0 %201, %v33
  %v203 = vpop.permute.xlu0 %202
  %205 = vset.pattern.permute.xlu0 1
  %206 = vperm.xlu0 %205, %v34
  %v207 = vpop.permute.xlu0 %206
  %209 = vset.pattern.permute.xlu0 1
  %210 = vperm.xlu0 %209, %v35
  %v211 = vpop.permute.xlu0 %210
  %213 = vset.pattern.permute.xlu0 1
  %214 = vperm.xlu0 %213, %v36
  %v215 = vpop.permute.xlu0 %214
  %217 = vset.pattern.permute.xlu0 1
  %218 = vperm.xlu0 %217, %v37
  %v219 = vpop.permute.xlu0 %218
  %v221 = vperm.slane %v21, 1
  %v222 = vperm.slane %v21, 5
  %v225 = vperm.slane %v221, 1
  %v226 = vperm.slane %v222, 1
  %v227 = vmul.f32 %v159, %v225
  %v228 = vmul.f32 %v159, %v226
  %v229 = vmul.f32 %v163, %v225
  %v230 = vmul.f32 %v163, %v226
  %v231 = vmul.f32 %v167, %v225
  %v232 = vmul.f32 %v167, %v226
  %v233 = vmul.f32 %v171, %v225
  %v234 = vmul.f32 %v171, %v226
  %v235 = vmul.f32 %v175, %v225
  %v236 = vmul.f32 %v175, %v226
  %v237 = vmul.f32 %v179, %v225
  %v238 = vmul.f32 %v179, %v226
  %v239 = vmul.f32 %v183, %v225
  %v240 = vmul.f32 %v183, %v226
  %v241 = vmul.f32 %v187, %v225
  %v242 = vmul.f32 %v187, %v226
  %v243 = vmul.f32 %v191, %v225
  %v244 = vmul.f32 %v191, %v226
  %v245 = vmul.f32 %v195, %v225
  %v246 = vmul.f32 %v195, %v226
  %v247 = vmul.f32 %v199, %v225
  %v248 = vmul.f32 %v199, %v226
  %v249 = vmul.f32 %v203, %v225
  %v250 = vmul.f32 %v203, %v226
  %v251 = vmul.f32 %v207, %v225
  %v252 = vmul.f32 %v207, %v226
  %v253 = vmul.f32 %v211, %v225
  %v254 = vmul.f32 %v211, %v226
  %v255 = vmul.f32 %v215, %v225
  %v256 = vmul.f32 %v215, %v226
  %v257 = vmul.f32 %v219, %v225
  %v258 = vmul.f32 %v219, %v226
  %v259 = vadd.f32 %v125, %v227
  %v260 = vadd.f32 %v126, %v228
  %v261 = vadd.f32 %v127, %v229
  %v262 = vadd.f32 %v128, %v230
  %v263 = vadd.f32 %v129, %v231
  %v264 = vadd.f32 %v130, %v232
  %v265 = vadd.f32 %v131, %v233
  %v266 = vadd.f32 %v132, %v234
  %v267 = vadd.f32 %v133, %v235
  %v268 = vadd.f32 %v134, %v236
  %v269 = vadd.f32 %v135, %v237
  %v270 = vadd.f32 %v136, %v238
  %v271 = vadd.f32 %v137, %v239
  %v272 = vadd.f32 %v138, %v240
  %v273 = vadd.f32 %v139, %v241
  %v274 = vadd.f32 %v140, %v242
  %v275 = vadd.f32 %v141, %v243
  %v276 = vadd.f32 %v142, %v244
  %v277 = vadd.f32 %v143, %v245
  %v278 = vadd.f32 %v144, %v246
  %v279 = vadd.f32 %v145, %v247
  %v280 = vadd.f32 %v146, %v248
  %v281 = vadd.f32 %v147, %v249
  %v282 = vadd.f32 %v148, %v250
  %v283 = vadd.f32 %v149, %v251
  %v284 = vadd.f32 %v150, %v252
  %v285 = vadd.f32 %v151, %v253
  %v286 = vadd.f32 %v152, %v254
  %v287 = vadd.f32 %v153, %v255
  %v288 = vadd.f32 %v154, %v256
  %v289 = vadd.f32 %v155, %v257
  %v290 = vadd.f32 %v156, %v258
  %291 = vset.pattern.permute.xlu0 2
  %292 = vperm.xlu0 %291, %v22
  %v293 = vpop.permute.xlu0 %292
  %295 = vset.pattern.permute.xlu0 2
  %296 = vperm.xlu0 %295, %v23
  %v297 = vpop.permute.xlu0 %296
  %299 = vset.pattern.permute.xlu0 2
  %300 = vperm.xlu0 %299, %v24
  %v301 = vpop.permute.xlu0 %300
  %303 = vset.pattern.permute.xlu0 2
  %304 = vperm.xlu0 %303, %v25
  %v305 = vpop.permute.xlu0 %304
  %307 = vset.pattern.permute.xlu0 2
  %308 = vperm.xlu0 %307, %v26
  %v309 = vpop.permute.xlu0 %308
  %311 = vset.pattern.permute.xlu0 2
  %312 = vperm.xlu0 %311, %v27
  %v313 = vpop.permute.xlu0 %312
  %315 = vset.pattern.permute.xlu0 2
  %316 = vperm.xlu0 %315, %v28
  %v317 = vpop.permute.xlu0 %316
  %319 = vset.pattern.permute.xlu0 2
  %320 = vperm.xlu0 %319, %v29
  %v321 = vpop.permute.xlu0 %320
  %323 = vset.pattern.permute.xlu0 2
  %324 = vperm.xlu0 %323, %v30
  %v325 = vpop.permute.xlu0 %324
  %327 = vset.pattern.permute.xlu0 2
  %328 = vperm.xlu0 %327, %v31
  %v329 = vpop.permute.xlu0 %328
  %331 = vset.pattern.permute.xlu0 2
  %332 = vperm.xlu0 %331, %v32
  %v333 = vpop.permute.xlu0 %332
  %335 = vset.pattern.permute.xlu0 2
  %336 = vperm.xlu0 %335, %v33
  %v337 = vpop.permute.xlu0 %336
  %339 = vset.pattern.permute.xlu0 2
  %340 = vperm.xlu0 %339, %v34
  %v341 = vpop.permute.xlu0 %340
  %343 = vset.pattern.permute.xlu0 2
  %344 = vperm.xlu0 %343, %v35
  %v345 = vpop.permute.xlu0 %344
  %347 = vset.pattern.permute.xlu0 2
  %348 = vperm.xlu0 %347, %v36
  %v349 = vpop.permute.xlu0 %348
  %351 = vset.pattern.permute.xlu0 2
  %352 = vperm.xlu0 %351, %v37
  %v353 = vpop.permute.xlu0 %352
  %v355 = vperm.slane %v21, 2
  %v356 = vperm.slane %v21, 6
  %v359 = vperm.slane %v355, 2
  %v360 = vperm.slane %v356, 2
  %v361 = vmul.f32 %v293, %v359
  %v362 = vmul.f32 %v293, %v360
  %v363 = vmul.f32 %v297, %v359
  %v364 = vmul.f32 %v297, %v360
  %v365 = vmul.f32 %v301, %v359
  %v366 = vmul.f32 %v301, %v360
  %v367 = vmul.f32 %v305, %v359
  %v368 = vmul.f32 %v305, %v360
  %v369 = vmul.f32 %v309, %v359
  %v370 = vmul.f32 %v309, %v360
  %v371 = vmul.f32 %v313, %v359
  %v372 = vmul.f32 %v313, %v360
  %v373 = vmul.f32 %v317, %v359
  %v374 = vmul.f32 %v317, %v360
  %v375 = vmul.f32 %v321, %v359
  %v376 = vmul.f32 %v321, %v360
  %v377 = vmul.f32 %v325, %v359
  %v378 = vmul.f32 %v325, %v360
  %v379 = vmul.f32 %v329, %v359
  %v380 = vmul.f32 %v329, %v360
  %v381 = vmul.f32 %v333, %v359
  %v382 = vmul.f32 %v333, %v360
  %v383 = vmul.f32 %v337, %v359
  %v384 = vmul.f32 %v337, %v360
  %v385 = vmul.f32 %v341, %v359
  %v386 = vmul.f32 %v341, %v360
  %v387 = vmul.f32 %v345, %v359
  %v388 = vmul.f32 %v345, %v360
  %v389 = vmul.f32 %v349, %v359
  %v390 = vmul.f32 %v349, %v360
  %v391 = vmul.f32 %v353, %v359
  %v392 = vmul.f32 %v353, %v360
  %v393 = vadd.f32 %v259, %v361
  %v394 = vadd.f32 %v260, %v362
  %v395 = vadd.f32 %v261, %v363
  %v396 = vadd.f32 %v262, %v364
  %v397 = vadd.f32 %v263, %v365
  %v398 = vadd.f32 %v264, %v366
  %v399 = vadd.f32 %v265, %v367
  %v400 = vadd.f32 %v266, %v368
  %v401 = vadd.f32 %v267, %v369
  %v402 = vadd.f32 %v268, %v370
  %v403 = vadd.f32 %v269, %v371
  %v404 = vadd.f32 %v270, %v372
  %v405 = vadd.f32 %v271, %v373
  %v406 = vadd.f32 %v272, %v374
  %v407 = vadd.f32 %v273, %v375
  %v408 = vadd.f32 %v274, %v376
  %v409 = vadd.f32 %v275, %v377
  %v410 = vadd.f32 %v276, %v378
  %v411 = vadd.f32 %v277, %v379
  %v412 = vadd.f32 %v278, %v380
  %v413 = vadd.f32 %v279, %v381
  %v414 = vadd.f32 %v280, %v382
  %v415 = vadd.f32 %v281, %v383
  %v416 = vadd.f32 %v282, %v384
  %v417 = vadd.f32 %v283, %v385
  %v418 = vadd.f32 %v284, %v386
  %v419 = vadd.f32 %v285, %v387
  %v420 = vadd.f32 %v286, %v388
  %v421 = vadd.f32 %v287, %v389
  %v422 = vadd.f32 %v288, %v390
  %v423 = vadd.f32 %v289, %v391
  %v424 = vadd.f32 %v290, %v392
  %425 = vset.pattern.permute.xlu0 3
  %426 = vperm.xlu0 %425, %v22
  %v427 = vpop.permute.xlu0 %426
  %429 = vset.pattern.permute.xlu0 3
  %430 = vperm.xlu0 %429, %v23
  %v431 = vpop.permute.xlu0 %430
  %433 = vset.pattern.permute.xlu0 3
  %434 = vperm.xlu0 %433, %v24
  %v435 = vpop.permute.xlu0 %434
  %437 = vset.pattern.permute.xlu0 3
  %438 = vperm.xlu0 %437, %v25
  %v439 = vpop.permute.xlu0 %438
  %441 = vset.pattern.permute.xlu0 3
  %442 = vperm.xlu0 %441, %v26
  %v443 = vpop.permute.xlu0 %442
  %445 = vset.pattern.permute.xlu0 3
  %446 = vperm.xlu0 %445, %v27
  %v447 = vpop.permute.xlu0 %446
  %449 = vset.pattern.permute.xlu0 3
  %450 = vperm.xlu0 %449, %v28
  %v451 = vpop.permute.xlu0 %450
  %453 = vset.pattern.permute.xlu0 3
  %454 = vperm.xlu0 %453, %v29
  %v455 = vpop.permute.xlu0 %454
  %457 = vset.pattern.permute.xlu0 3
  %458 = vperm.xlu0 %457, %v30
  %v459 = vpop.permute.xlu0 %458
  %461 = vset.pattern.permute.xlu0 3
  %462 = vperm.xlu0 %461, %v31
  %v463 = vpop.permute.xlu0 %462
  %465 = vset.pattern.permute.xlu0 3
  %466 = vperm.xlu0 %465, %v32
  %v467 = vpop.permute.xlu0 %466
  %469 = vset.pattern.permute.xlu0 3
  %470 = vperm.xlu0 %469, %v33
  %v471 = vpop.permute.xlu0 %470
  %473 = vset.pattern.permute.xlu0 3
  %474 = vperm.xlu0 %473, %v34
  %v475 = vpop.permute.xlu0 %474
  %477 = vset.pattern.permute.xlu0 3
  %478 = vperm.xlu0 %477, %v35
  %v479 = vpop.permute.xlu0 %478
  %481 = vset.pattern.permute.xlu0 3
  %482 = vperm.xlu0 %481, %v36
  %v483 = vpop.permute.xlu0 %482
  %485 = vset.pattern.permute.xlu0 3
  %486 = vperm.xlu0 %485, %v37
  %v487 = vpop.permute.xlu0 %486
  %v489 = vperm.slane %v21, 3
  %v490 = vperm.slane %v21, 7
  %v493 = vperm.slane %v489, 3
  %v494 = vperm.slane %v490, 3
  %v495 = vmul.f32 %v427, %v493
  %v496 = vmul.f32 %v427, %v494
  %v497 = vmul.f32 %v431, %v493
  %v498 = vmul.f32 %v431, %v494
  %v499 = vmul.f32 %v435, %v493
  %v500 = vmul.f32 %v435, %v494
  %v501 = vmul.f32 %v439, %v493
  %v502 = vmul.f32 %v439, %v494
  %v503 = vmul.f32 %v443, %v493
  %v504 = vmul.f32 %v443, %v494
  %v505 = vmul.f32 %v447, %v493
  %v506 = vmul.f32 %v447, %v494
  %v507 = vmul.f32 %v451, %v493
  %v508 = vmul.f32 %v451, %v494
  %v509 = vmul.f32 %v455, %v493
  %v510 = vmul.f32 %v455, %v494
  %v511 = vmul.f32 %v459, %v493
  %v512 = vmul.f32 %v459, %v494
  %v513 = vmul.f32 %v463, %v493
  %v514 = vmul.f32 %v463, %v494
  %v515 = vmul.f32 %v467, %v493
  %v516 = vmul.f32 %v467, %v494
  %v517 = vmul.f32 %v471, %v493
  %v518 = vmul.f32 %v471, %v494
  %v519 = vmul.f32 %v475, %v493
  %v520 = vmul.f32 %v475, %v494
  %v521 = vmul.f32 %v479, %v493
  %v522 = vmul.f32 %v479, %v494
  %v523 = vmul.f32 %v483, %v493
  %v524 = vmul.f32 %v483, %v494
  %v525 = vmul.f32 %v487, %v493
  %v526 = vmul.f32 %v487, %v494
  %v527 = vadd.f32 %v393, %v495
  %v528 = vadd.f32 %v394, %v496
  %v529 = vadd.f32 %v395, %v497
  %v530 = vadd.f32 %v396, %v498
  %v531 = vadd.f32 %v397, %v499
  %v532 = vadd.f32 %v398, %v500
  %v533 = vadd.f32 %v399, %v501
  %v534 = vadd.f32 %v400, %v502
  %v535 = vadd.f32 %v401, %v503
  %v536 = vadd.f32 %v402, %v504
  %v537 = vadd.f32 %v403, %v505
  %v538 = vadd.f32 %v404, %v506
  %v539 = vadd.f32 %v405, %v507
  %v540 = vadd.f32 %v406, %v508
  %v541 = vadd.f32 %v407, %v509
  %v542 = vadd.f32 %v408, %v510
  %v543 = vadd.f32 %v409, %v511
  %v544 = vadd.f32 %v410, %v512
  %v545 = vadd.f32 %v411, %v513
  %v546 = vadd.f32 %v412, %v514
  %v547 = vadd.f32 %v413, %v515
  %v548 = vadd.f32 %v414, %v516
  %v549 = vadd.f32 %v415, %v517
  %v550 = vadd.f32 %v416, %v518
  %v551 = vadd.f32 %v417, %v519
  %v552 = vadd.f32 %v418, %v520
  %v553 = vadd.f32 %v419, %v521
  %v554 = vadd.f32 %v420, %v522
  %v555 = vadd.f32 %v421, %v523
  %v556 = vadd.f32 %v422, %v524
  %v557 = vadd.f32 %v423, %v525
  %v558 = vadd.f32 %v424, %v526
  %v559 = vld [vmem:[%s2] sm:$0xff]
  %v560 = vld [vmem:[%s2 + $0x8] sm:$0xff]
  %v561 = vld [vmem:[%s2 + $0x10] sm:$0xff]
  %v562 = vld [vmem:[%s2 + $0x18] sm:$0xff]
  %v563 = vld [vmem:[%s2 + $0x20] sm:$0xff]
  %v564 = vld [vmem:[%s2 + $0x28] sm:$0xff]
  %v565 = vld [vmem:[%s2 + $0x30] sm:$0xff]
  %v566 = vld [vmem:[%s2 + $0x38] sm:$0xff]
  %v567 = vld [vmem:[%s2 + $0x40] sm:$0xff]
  %v568 = vld [vmem:[%s2 + $0x48] sm:$0xff]
  %v569 = vld [vmem:[%s2 + $0x50] sm:$0xff]
  %v570 = vld [vmem:[%s2 + $0x58] sm:$0xff]
  %v571 = vld [vmem:[%s2 + $0x60] sm:$0xff]
  %v572 = vld [vmem:[%s2 + $0x68] sm:$0xff]
  %v573 = vld [vmem:[%s2 + $0x70] sm:$0xff]
  %v574 = vld [vmem:[%s2 + $0x78] sm:$0xff]
  %576 = vset.pattern.permute.xlu0 0
  %577 = vperm.xlu0 %576, %v559
  %v578 = vpop.permute.xlu0 %577
  %581 = vset.pattern.permute.xlu0 0
  %582 = vperm.xlu0 %581, %v560
  %v583 = vpop.permute.xlu0 %582
  %586 = vset.pattern.permute.xlu0 0
  %587 = vperm.xlu0 %586, %v561
  %v588 = vpop.permute.xlu0 %587
  %591 = vset.pattern.permute.xlu0 0
  %592 = vperm.xlu0 %591, %v562
  %v593 = vpop.permute.xlu0 %592
  %596 = vset.pattern.permute.xlu0 0
  %597 = vperm.xlu0 %596, %v563
  %v598 = vpop.permute.xlu0 %597
  %601 = vset.pattern.permute.xlu0 0
  %602 = vperm.xlu0 %601, %v564
  %v603 = vpop.permute.xlu0 %602
  %606 = vset.pattern.permute.xlu0 0
  %607 = vperm.xlu0 %606, %v565
  %v608 = vpop.permute.xlu0 %607
  %611 = vset.pattern.permute.xlu0 0
  %612 = vperm.xlu0 %611, %v566
  %v613 = vpop.permute.xlu0 %612
  %616 = vset.pattern.permute.xlu0 0
  %617 = vperm.xlu0 %616, %v567
  %v618 = vpop.permute.xlu0 %617
  %621 = vset.pattern.permute.xlu0 0
  %622 = vperm.xlu0 %621, %v568
  %v623 = vpop.permute.xlu0 %622
  %626 = vset.pattern.permute.xlu0 0
  %627 = vperm.xlu0 %626, %v569
  %v628 = vpop.permute.xlu0 %627
  %631 = vset.pattern.permute.xlu0 0
  %632 = vperm.xlu0 %631, %v570
  %v633 = vpop.permute.xlu0 %632
  %636 = vset.pattern.permute.xlu0 0
  %637 = vperm.xlu0 %636, %v571
  %v638 = vpop.permute.xlu0 %637
  %641 = vset.pattern.permute.xlu0 0
  %642 = vperm.xlu0 %641, %v572
  %v643 = vpop.permute.xlu0 %642
  %646 = vset.pattern.permute.xlu0 0
  %647 = vperm.xlu0 %646, %v573
  %v648 = vpop.permute.xlu0 %647
  %651 = vset.pattern.permute.xlu0 0
  %652 = vperm.xlu0 %651, %v574
  %v653 = vpop.permute.xlu0 %652
  %v655 = vadd.f32 %v527, %v578
  %v656 = vadd.f32 %v528, %v578
  %v657 = vadd.f32 %v529, %v583
  %v658 = vadd.f32 %v530, %v583
  %v659 = vadd.f32 %v531, %v588
  %v660 = vadd.f32 %v532, %v588
  %v661 = vadd.f32 %v533, %v593
  %v662 = vadd.f32 %v534, %v593
  %v663 = vadd.f32 %v535, %v598
  %v664 = vadd.f32 %v536, %v598
  %v665 = vadd.f32 %v537, %v603
  %v666 = vadd.f32 %v538, %v603
  %v667 = vadd.f32 %v539, %v608
  %v668 = vadd.f32 %v540, %v608
  %v669 = vadd.f32 %v541, %v613
  %v670 = vadd.f32 %v542, %v613
  %v671 = vadd.f32 %v543, %v618
  %v672 = vadd.f32 %v544, %v618
  %v673 = vadd.f32 %v545, %v623
  %v674 = vadd.f32 %v546, %v623
  %v675 = vadd.f32 %v547, %v628
  %v676 = vadd.f32 %v548, %v628
  %v677 = vadd.f32 %v549, %v633
  %v678 = vadd.f32 %v550, %v633
  %v679 = vadd.f32 %v551, %v638
  %v680 = vadd.f32 %v552, %v638
  %v681 = vadd.f32 %v553, %v643
  %v682 = vadd.f32 %v554, %v643
  %v683 = vadd.f32 %v555, %v648
  %v684 = vadd.f32 %v556, %v648
  %v685 = vadd.f32 %v557, %v653
  %v686 = vadd.f32 %v558, %v653
  %v687 = vmax.f32 %v655, 0.0
  %v688 = vmax.f32 %v656, 0.0
  %v689 = vmax.f32 %v657, 0.0
  %v690 = vmax.f32 %v658, 0.0
  %v691 = vmax.f32 %v659, 0.0
  %v692 = vmax.f32 %v660, 0.0
  %v693 = vmax.f32 %v661, 0.0
  %v694 = vmax.f32 %v662, 0.0
  %v695 = vmax.f32 %v663, 0.0
  %v696 = vmax.f32 %v664, 0.0
  %v697 = vmax.f32 %v665, 0.0
  %v698 = vmax.f32 %v666, 0.0
  %v699 = vmax.f32 %v667, 0.0
  %v700 = vmax.f32 %v668, 0.0
  %v701 = vmax.f32 %v669, 0.0
  %v702 = vmax.f32 %v670, 0.0
  %v703 = vmax.f32 %v671, 0.0
  %v704 = vmax.f32 %v672, 0.0
  %v705 = vmax.f32 %v673, 0.0
  %v706 = vmax.f32 %v674, 0.0
  %v707 = vmax.f32 %v675, 0.0
  %v708 = vmax.f32 %v676, 0.0
  %v709 = vmax.f32 %v677, 0.0
  %v710 = vmax.f32 %v678, 0.0
  %v711 = vmax.f32 %v679, 0.0
  %v712 = vmax.f32 %v680, 0.0
  %v713 = vmax.f32 %v681, 0.0
  %v714 = vmax.f32 %v682, 0.0
  %v715 = vmax.f32 %v683, 0.0
  %v716 = vmax.f32 %v684, 0.0
  %v717 = vmax.f32 %v685, 0.0
  %v718 = vmax.f32 %v686, 0.0
  %v719 = vld [vmem:[%s3] sm:$0xff]
  %v720 = vld [vmem:[%s3 + $0x8] sm:$0xff]
  %v721 = vld [vmem:[%s3 + $0x10] sm:$0xff]
  %v722 = vld [vmem:[%s3 + $0x18] sm:$0xff]
  %v723 = vld [vmem:[%s3 + $0x20] sm:$0xff]
  %v724 = vld [vmem:[%s3 + $0x28] sm:$0xff]
  %v725 = vld [vmem:[%s3 + $0x30] sm:$0xff]
  %v726 = vld [vmem:[%s3 + $0x38] sm:$0xff]
  %v727 = vld [vmem:[%s3 + $0x40] sm:$0xff]
  %v728 = vld [vmem:[%s3 + $0x48] sm:$0xff]
  %v729 = vld [vmem:[%s3 + $0x50] sm:$0xff]
  %v730 = vld [vmem:[%s3 + $0x58] sm:$0xff]
  %v731 = vld [vmem:[%s3 + $0x60] sm:$0xff]
  %v732 = vld [vmem:[%s3 + $0x68] sm:$0xff]
  %v733 = vld [vmem:[%s3 + $0x70] sm:$0xff]
  %v734 = vld [vmem:[%s3 + $0x78] sm:$0xff]
  %736 = vset.pattern.permute.xlu0 0
  %737 = vperm.xlu0 %736, %v719
  %v738 = vpop.permute.xlu0 %737
  %741 = vset.pattern.permute.xlu0 0
  %742 = vperm.xlu0 %741, %v720
  %v743 = vpop.permute.xlu0 %742
  %746 = vset.pattern.permute.xlu0 0
  %747 = vperm.xlu0 %746, %v721
  %v748 = vpop.permute.xlu0 %747
  %751 = vset.pattern.permute.xlu0 0
  %752 = vperm.xlu0 %751, %v722
  %v753 = vpop.permute.xlu0 %752
  %756 = vset.pattern.permute.xlu0 0
  %757 = vperm.xlu0 %756, %v723
  %v758 = vpop.permute.xlu0 %757
  %761 = vset.pattern.permute.xlu0 0
  %762 = vperm.xlu0 %761, %v724
  %v763 = vpop.permute.xlu0 %762
  %766 = vset.pattern.permute.xlu0 0
  %767 = vperm.xlu0 %766, %v725
  %v768 = vpop.permute.xlu0 %767
  %771 = vset.pattern.permute.xlu0 0
  %772 = vperm.xlu0 %771, %v726
  %v773 = vpop.permute.xlu0 %772
  %776 = vset.pattern.permute.xlu0 0
  %777 = vperm.xlu0 %776, %v727
  %v778 = vpop.permute.xlu0 %777
  %781 = vset.pattern.permute.xlu0 0
  %782 = vperm.xlu0 %781, %v728
  %v783 = vpop.permute.xlu0 %782
  %786 = vset.pattern.permute.xlu0 0
  %787 = vperm.xlu0 %786, %v729
  %v788 = vpop.permute.xlu0 %787
  %791 = vset.pattern.permute.xlu0 0
  %792 = vperm.xlu0 %791, %v730
  %v793 = vpop.permute.xlu0 %792
  %796 = vset.pattern.permute.xlu0 0
  %797 = vperm.xlu0 %796, %v731
  %v798 = vpop.permute.xlu0 %797
  %801 = vset.pattern.permute.xlu0 0
  %802 = vperm.xlu0 %801, %v732
  %v803 = vpop.permute.xlu0 %802
  %806 = vset.pattern.permute.xlu0 0
  %807 = vperm.xlu0 %806, %v733
  %v808 = vpop.permute.xlu0 %807
  %811 = vset.pattern.permute.xlu0 0
  %812 = vperm.xlu0 %811, %v734
  %v813 = vpop.permute.xlu0 %812
  %v815 = vmul.f32 %v687, %v738
  %v816 = vmul.f32 %v688, %v738
  %v817 = vmul.f32 %v689, %v743
  %v818 = vmul.f32 %v690, %v743
  %v819 = vmul.f32 %v691, %v748
  %v820 = vmul.f32 %v692, %v748
  %v821 = vmul.f32 %v693, %v753
  %v822 = vmul.f32 %v694, %v753
  %v823 = vmul.f32 %v695, %v758
  %v824 = vmul.f32 %v696, %v758
  %v825 = vmul.f32 %v697, %v763
  %v826 = vmul.f32 %v698, %v763
  %v827 = vmul.f32 %v699, %v768
  %v828 = vmul.f32 %v700, %v768
  %v829 = vmul.f32 %v701, %v773
  %v830 = vmul.f32 %v702, %v773
  %v831 = vmul.f32 %v703, %v778
  %v832 = vmul.f32 %v704, %v778
  %v833 = vmul.f32 %v705, %v783
  %v834 = vmul.f32 %v706, %v783
  %v835 = vmul.f32 %v707, %v788
  %v836 = vmul.f32 %v708, %v788
  %v837 = vmul.f32 %v709, %v793
  %v838 = vmul.f32 %v710, %v793
  %v839 = vmul.f32 %v711, %v798
  %v840 = vmul.f32 %v712, %v798
  %v841 = vmul.f32 %v713, %v803
  %v842 = vmul.f32 %v714, %v803
  %v843 = vmul.f32 %v715, %v808
  %v844 = vmul.f32 %v716, %v808
  %v845 = vmul.f32 %v717, %v813
  %v846 = vmul.f32 %v718, %v813
  %v847 = vadd.f32 %v815, %v817
  %v848 = vadd.f32 %v847, %v819
  %v849 = vadd.f32 %v848, %v821
  %v850 = vadd.f32 %v849, %v823
  %v851 = vadd.f32 %v850, %v825
  %v852 = vadd.f32 %v851, %v827
  %v853 = vadd.f32 %v852, %v829
  %v854 = vadd.f32 %v853, %v831
  %v855 = vadd.f32 %v854, %v833
  %v856 = vadd.f32 %v855, %v835
  %v857 = vadd.f32 %v856, %v837
  %v858 = vadd.f32 %v857, %v839
  %v859 = vadd.f32 %v858, %v841
  %v860 = vadd.f32 %v859, %v843
  %v861 = vadd.f32 %v860, %v845
  %v862 = vrot.slane %v861, 4
  %v863 = vadd.f32 %v861, %v862
  %v864 = vrot.slane %v863, 2
  %v865 = vadd.f32 %v863, %v864
  %v866 = vrot.slane %v865, 1
  %v867 = vadd.f32 %v865, %v866
  %v868 = vadd.f32 %v816, %v818
  %v869 = vadd.f32 %v868, %v820
  %v870 = vadd.f32 %v869, %v822
  %v871 = vadd.f32 %v870, %v824
  %v872 = vadd.f32 %v871, %v826
  %v873 = vadd.f32 %v872, %v828
  %v874 = vadd.f32 %v873, %v830
  %v875 = vadd.f32 %v874, %v832
  %v876 = vadd.f32 %v875, %v834
  %v877 = vadd.f32 %v876, %v836
  %v878 = vadd.f32 %v877, %v838
  %v879 = vadd.f32 %v878, %v840
  %v880 = vadd.f32 %v879, %v842
  %v881 = vadd.f32 %v880, %v844
  %v882 = vadd.f32 %v881, %v846
  %v883 = vrot.slane %v882, 4
  %v884 = vadd.f32 %v882, %v883
  %v885 = vrot.slane %v884, 2
  %v886 = vadd.f32 %v884, %v885
  %v887 = vrot.slane %v886, 1
  %v888 = vadd.f32 %v886, %v887
  %s889 = sld [smem:[#allocation2]]
  %v890 = vstv %s889
  %v891 = vadd.f32 %v867, %v890
  %v892 = vadd.f32 %v888, %v890
  %v893 = vand.u32 2147483647, %v891
  %v894 = vand.u32 2147483647, %v892
  %v895 = vsub.f32 0.0, %v893
  %v896 = vsub.f32 0.0, %v894
  %v897 = vmul.f32 %v895, 1.442695
  %v898 = vpow.pop %v897
  %v899 = vmul.f32 %v896, 1.442695
  %v900 = vpow.pop %v899
  %v901 = vadd.f32 %v898, 1.0
  %v902 = vadd.f32 %v900, 1.0
  %v903 = vrcp.pop %v901
  %v904 = vmul.f32 %v901, %v903
  %v905 = vsub.f32 1.0, %v904
  %v906 = vmul.f32 %v903, %v905
  %v907 = vadd.f32 %v903, %v906
  %vm908 = vweird.f32 %v901
  %vm909 = vweird.f32 %v903
  %vm910 = vmor %vm908, %vm909
  %v911 = vsel %vm910, %v903, %v907
  %v912 = vand.u32 2147483647, %v901
  %vm913 = vcmp.eq.f32.partialorder %v912, 8.507059e+37
  %v914 = vand.u32 %v901, 2147483648
  %v915 = vor.u32 1.1754944e-38, %v914
  %v916 = vsel %vm913, %v915, %v911
  %v917 = vmul.f32 1.0, %v916
  %v918 = vrcp.pop %v902
  %v919 = vmul.f32 %v902, %v918
  %v920 = vsub.f32 1.0, %v919
  %v921 = vmul.f32 %v918, %v920
  %v922 = vadd.f32 %v918, %v921
  %vm923 = vweird.f32 %v902
  %vm924 = vweird.f32 %v918
  %vm925 = vmor %vm923, %vm924
  %v926 = vsel %vm925, %v918, %v922
  %v927 = vand.u32 2147483647, %v902
  %vm928 = vcmp.eq.f32.partialorder %v927, 8.507059e+37
  %v929 = vand.u32 %v902, 2147483648
  %v930 = vor.u32 1.1754944e-38, %v929
  %v931 = vsel %vm928, %v930, %v926
  %v932 = vmul.f32 1.0, %v931
  %v933 = vmul.f32 %v898, %v917
  %v934 = vmul.f32 %v900, %v932
  %vm935 = vcmp.ge.f32.partialorder %v891, 0.0
  %vm936 = vcmp.ge.f32.partialorder %v892, 0.0
  %v937 = vsel %vm935, %v917, %v933
  %v938 = vsel %vm936, %v932, %v934
  %v939 = vsel %vm935, %v933, %v917
  %v940 = vsel %vm936, %v934, %v932
  %v943 = vrot.slane %v940, 7
  %vm944 = vcmask 1040384
  %v945 = vsel %vm944, %v939, %v943
  %v947 = vlaneseq
  %vm948 = vcmp.ge.s32.totalorder %v947, 0
  %vm949 = vcmp.lt.s32.totalorder %v947, 256
  %vm950 = vmand %vm948, %vm949
  %951 = vst.msk [vmem:[%s5] ss:$2 sm:$0x3] %vm950, %v945
  %v954 = vrot.slane %v938, 7
  %v955 = vsel %vm944, %v937, %v954
  %s957 = scalar_lea.vmem %s5, 1
  %958 = vst.msk [vmem:[%s957] ss:$2 sm:$0x3] %vm950, %v955
  // Predicated region
  $region22: #{linear4x2_forward.1} parent=0 // pred_check
    _
  $region23: #{linear4x2_forward.1} parent=0 // pred_check_branch
    %960 = sbr.rel (0) target = $region25
  $region24: #{linear4x2_forward.1} parent=0 // pred_region
    _
  $region25: #{linear4x2_forward.1} parent=0 // pred_fallthru
    _
  // Predicated region
  $region26: #{linear4x2_forward.1} parent=0 // pred_check
    _
  $region27: #{linear4x2_forward.1} parent=0 // pred_check_branch
    %962 = sbr.rel (0) target = $region29
  $region28: #{linear4x2_forward.1} parent=0 // pred_region
    _
  $region29: #{linear4x2_forward.1} parent=0 // pred_fallthru
    _

</llo_original>
